<compile_context>
chip_gen: v5e
topology: v5e:2x2
jax: 0.10.0
libtpu: 0.0.40
codegen_flags: <defaults>
</compile_context>

<pallas_src>
import jax
import jax.numpy as jnp
from jax import lax
from jax.experimental import pallas as pl
from jax.experimental.pallas import tpu as pltpu


def _softplus(x):
    # Matches torch.nn.functional.softplus (beta=1, threshold=20).
    return jnp.where(x > 20.0, x, jnp.log1p(jnp.exp(x)))


def _cond_guided_kernel(
    eps_ref,                   # [1, TS, D1]   packed layer-1 input
    g_ref,                     # [1, 3, H]     pre-gathered gammas E1/E2/E3 at t[b]
    w1_ref, b1_ref,            # [D1, H], [1, H]
    w2_ref, b2_ref,            # [H, H],  [1, H]
    w3_ref, b3_ref,            # [H, H],  [1, H]
    w4t_ref, b4t_ref,          # [C, H],  [C, 1]   (final layer pre-transposed)
    o_ref,                     # [1, C, TS]        lane-dense output slab
):
    cdt = w2_ref.dtype                          # MXU operand dtype (bf16 default)
    eps = eps_ref[0].astype(cdt)                # (TS, D1)
    g = g_ref[0]                                # (3, H) f32, per-batch gammas
    g1, g2, g3 = g[0:1], g[1:2], g[2:3]

    # --- ConditionalLinear 1 + softplus (single fused K=D1 matmul) ---
    h = jnp.dot(eps, w1_ref[...], preferred_element_type=jnp.float32) + b1_ref[...]
    h = _softplus(g1 * h)

    # --- ConditionalLinear 2 + softplus ---
    h = jnp.dot(h.astype(cdt), w2_ref[...],
                preferred_element_type=jnp.float32) + b2_ref[...]
    h = _softplus(g2 * h)

    # --- ConditionalLinear 3 + softplus ---
    h = jnp.dot(h.astype(cdt), w3_ref[...],
                preferred_element_type=jnp.float32) + b3_ref[...]
    h = _softplus(g3 * h)

    # --- final Linear(H -> C), computed transposed for a lane-dense store ---
    # (C, H) x (TS, H)^T -> (C, TS): C << 128 rides the sublane axis, the long
    # TS axis is lane-dense, so the output store is unmasked.
    out_t = lax.dot_general(
        w4t_ref[...], h.astype(cdt),
        dimension_numbers=(((1,), (1,)), ((), ())),
        preferred_element_type=jnp.float32) + b4t_ref[...]
    o_ref[0] = out_t.astype(o_ref.dtype)


def _pick_tiling(B, S):
    """Full-S tiles by default (grid = (B, 1)); VMEM-safe cap for very long S."""
    CAP = 4096   # keeps the handful of f32 (TS, 128) temporaries well inside
                 # scoped VMEM on v5e/v6e/v7x with the explicit 32 MiB limit.
    ts = S
    if S > CAP:
        for cand in (4096, 2048, 1024, 512, 256, 128):
            if S % cand == 0:
                ts = cand
                break
    nm = S // ts
    # v7x has 2 TensorCores: expose >= 2 parallel grid steps when possible.
    if B * nm < 2:
        half = ts // 2
        if half > 0 and ts % 2 == 0 and half % 128 == 0:
            ts, nm = half, S // half
    return ts, nm


def conditional_guided_forward(params, x, y_t, y_0_hat, t,
                               cat_x=True, cat_y_pred=True,
                               compute_dtype=jnp.bfloat16):
    """ConditionalGuidedModel forward as one pallas_call.

    compute_dtype: MXU operand dtype (bf16 default; pass jnp.float32 for parity runs).
    """
    B, S, enc_in = y_t.shape
    H = params["w2"].shape[0]          # 128
    C = params["w4"].shape[1]          # enc_in
    t = t.astype(jnp.int32)

    # Build the packed layer-1 input once in the wrapper (single fused matmul
    # in the kernel). Flag combinations are static Python -> free specialization:
    # the single-input path drops the concat, the zero weights, and one DMA stream.
    if cat_x:
        second = y_0_hat if cat_y_pred else x
    elif cat_y_pred:
        second = y_0_hat
    else:
        second = None
    eps = y_t if second is None else jnp.concatenate((y_t, second), axis=-1)
    D1 = eps.shape[-1]
    assert params["w1"].shape[0] == D1, (params["w1"].shape, D1)

    cdt = jnp.dtype(compute_dtype)
    w1 = params["w1"].astype(cdt)
    w2 = params["w2"].astype(cdt)
    w3 = params["w3"].astype(cdt)
    w4t = params["w4"].T.astype(cdt)                       # (C, H), pre-transposed

    # Biases and gammas stay f32 (VPU/EUP math in f32 everywhere; v5e-safe).
    # TODO(synk): on v6e/v7x the gamma*softplus chain could run in bf16 (bf16 VPU/EUP).
    b1 = params["b1"].reshape(1, H).astype(jnp.float32)
    b2 = params["b2"].reshape(1, H).astype(jnp.float32)
    b3 = params["b3"].reshape(1, H).astype(jnp.float32)
    b4t = params["b4"].reshape(C, 1).astype(jnp.float32)

    # Pre-gather the three timestep embeddings into one (B, 3, H) array:
    # a single tiny gamma DMA per grid step, no scalar prefetch needed.
    g = jnp.stack(
        [params["e1"][t], params["e2"][t], params["e3"][t]], axis=1
    ).astype(jnp.float32)

    TS, NM = _pick_tiling(B, S)

    eps_map = lambda b, m: (b, m, 0)
    gamma_map = lambda b, m: (b, 0, 0)
    whole = lambda b, m: (0, 0)    # constant block index -> no re-DMA across steps
    out_map = lambda b, m: (b, 0, m)

    in_specs = [
        pl.BlockSpec((1, TS, D1), eps_map),   # packed eps
        pl.BlockSpec((1, 3, H), gamma_map),   # gammas E1/E2/E3 at t[b]
        pl.BlockSpec((D1, H), whole),         # W1
        pl.BlockSpec((1, H), whole),          # b1
        pl.BlockSpec((H, H), whole),          # W2
        pl.BlockSpec((1, H), whole),          # b2
        pl.BlockSpec((H, H), whole),          # W3
        pl.BlockSpec((1, H), whole),          # b3
        pl.BlockSpec((C, H), whole),          # W4^T
        pl.BlockSpec((C, 1), whole),          # b4 (column)
    ]
    out_specs = pl.BlockSpec((1, C, TS), out_map)

    M = B * S
    cost = pl.CostEstimate(
        flops=2 * M * (D1 * H + 2 * H * H + H * C),
        transcendentals=6 * M * H,                       # exp + log1p, 3 layers
        bytes_accessed=int(
            eps.size * 4 + M * C * 4
            + (w1.size + w2.size + w3.size + w4t.size) * cdt.itemsize
            + (b1.size + b2.size + b3.size + b4t.size + g.size) * 4),
    )

    out_t = pl.pallas_call(
        _cond_guided_kernel,
        out_shape=jax.ShapeDtypeStruct((B, C, S), jnp.float32),
        grid=(B, NM),
        in_specs=in_specs,
        out_specs=out_specs,
        compiler_params=pltpu.CompilerParams(
            dimension_semantics=("parallel", "parallel"),
            vmem_limit_bytes=32 * 1024 * 1024),
        cost_estimate=cost,
    )(eps, g, w1, b1, w2, b2, w3, b3, w4t, b4t)

    # Kernel emits a lane-dense (B, C, S) slab; restore the module's (B, S, C).
    return out_t.transpose(0, 2, 1)


def init_params(key, enc_in, n_steps, hidden=128, cat_y_pred=True):
    """Deterministic parameter init mirroring the PyTorch module's shapes."""
    data_dim = enc_in * 2 if cat_y_pred else enc_in
    ks = jax.random.split(key, 11)

    def linear(kw, kb, fan_in, fan_out):
        bound = 1.0 / jnp.sqrt(fan_in)
        w = jax.random.uniform(kw, (fan_in, fan_out), jnp.float32, -bound, bound)
        b = jax.random.uniform(kb, (fan_out,), jnp.float32, -bound, bound)
        return w, b

    w1, b1 = linear(ks[0], ks[1], data_dim, hidden)
    w2, b2 = linear(ks[2], ks[3], hidden, hidden)
    w3, b3 = linear(ks[4], ks[5], hidden, hidden)
    w4, b4 = linear(ks[6], ks[7], hidden, enc_in)
    # nn.Embedding(...).weight.data.uniform_() -> U[0, 1)
    e1 = jax.random.uniform(ks[8], (n_steps, hidden), jnp.float32)
    e2 = jax.random.uniform(ks[9], (n_steps, hidden), jnp.float32)
    e3 = jax.random.uniform(ks[10], (n_steps, hidden), jnp.float32)
    return dict(w1=w1, b1=b1, e1=e1, w2=w2, b2=b2, e2=e2,
                w3=w3, b3=b3, e3=e3, w4=w4, b4=b4)


def _reference_forward(params, x, y_t, y_0_hat, t, compute_dtype=jnp.float32):
    """Pure-JAX reference (mirrors the PyTorch forward); optional bf16 matmuls."""
    cdt = jnp.dtype(compute_dtype)
    eps = jnp.concatenate((y_t, y_0_hat), axis=-1)

    def cond_lin(h, w, b, e):
        out = jnp.dot(h.astype(cdt), w.astype(cdt),
                      preferred_element_type=jnp.float32) + b
        gamma = e[t][:, None, :]
        return gamma * out

    h = _softplus(cond_lin(eps, params["w1"], params["b1"], params["e1"]))
    h = _softplus(cond_lin(h, params["w2"], params["b2"], params["e2"]))
    h = _softplus(cond_lin(h, params["w3"], params["b3"], params["e3"]))
    return (jnp.dot(h.astype(cdt), params["w4"].astype(cdt),
                    preferred_element_type=jnp.float32) + params["b4"])


if __name__ == "__main__":
    # Small shapes implied by the forward: [batch, seq, enc_in] activations.
    B, S, ENC_IN = 2, 8, 4
    TIMESTEPS = 10
    N_STEPS = TIMESTEPS + 1

    key = jax.random.PRNGKey(0)
    kp, kx, kyt, kyh, kt = jax.random.split(key, 5)

    params = init_params(kp, ENC_IN, N_STEPS)

    x = jax.random.normal(kx, (B, S, ENC_IN), jnp.float32)
    y_t = jax.random.normal(kyt, (B, S, ENC_IN), jnp.float32)
    y_0_hat = jax.random.normal(kyh, (B, S, ENC_IN), jnp.float32)
    t = jax.random.randint(kt, (B,), 0, N_STEPS, jnp.int32)

    # Default path: bf16 MXU operands, f32 accumulation / elementwise.
    out = conditional_guided_forward(params, x, y_t, y_0_hat, t)
    out = jax.block_until_ready(out)
    assert out.shape == (B, S, ENC_IN), out.shape

    # Check against a reference using the same bf16-operand matmuls (tight),
    ref_bf16 = _reference_forward(params, x, y_t, y_0_hat, t,
                                  compute_dtype=jnp.bfloat16)
    assert jnp.allclose(out, ref_bf16, atol=1e-2, rtol=1e-2), "bf16 mismatch"

    # ... and against the full-f32 reference (loose: bf16 rounding of operands).
    ref_f32 = _reference_forward(params, x, y_t, y_0_hat, t,
                                 compute_dtype=jnp.float32)
    assert jnp.allclose(out, ref_f32, atol=6e-2, rtol=6e-2), "f32 mismatch"

    # Full-f32 kernel parity run (escape hatch used for exact comparisons).
    out_f32 = conditional_guided_forward(params, x, y_t, y_0_hat, t,
                                         compute_dtype=jnp.float32)
    out_f32 = jax.block_until_ready(out_f32)
    assert jnp.allclose(out_f32, ref_f32, atol=1e-4, rtol=1e-4), "f32-kernel mismatch"

    print("KERNEL_OK")
</pallas_src>

<mosaic_0001>
module attributes {stable_mosaic.version = 11 : i64} {
  func.func @_cond_guided_kernel(%arg0: i32, %arg1: i32, %arg2: memref<1x8x8xf32, #tpu.memory_space<vmem>>, %arg3: memref<1x3x128xf32, #tpu.memory_space<vmem>>, %arg4: memref<8x128xbf16, #tpu.memory_space<vmem>>, %arg5: memref<1x128xf32, #tpu.memory_space<vmem>>, %arg6: memref<128x128xbf16, #tpu.memory_space<vmem>>, %arg7: memref<1x128xf32, #tpu.memory_space<vmem>>, %arg8: memref<128x128xbf16, #tpu.memory_space<vmem>>, %arg9: memref<1x128xf32, #tpu.memory_space<vmem>>, %arg10: memref<4x128xbf16, #tpu.memory_space<vmem>>, %arg11: memref<4x1xf32, #tpu.memory_space<vmem>>, %arg12: memref<1x4x8xf32, #tpu.memory_space<vmem>>) attributes {dimension_semantics = [#tpu.dimension_semantics<parallel>, #tpu.dimension_semantics<parallel>], iteration_bounds = array<i64: 2, 1>, scalar_prefetch = 0 : i64, scratch_operands = 0 : i64, tpu.core_type = #tpu.core_type<tc>, window_params = [{transform_indices = @transform_0, window_bounds = array<i64: 1, 8, 8>}, {transform_indices = @transform_1, window_bounds = array<i64: 1, 3, 128>}, {pipeline_mode = #tpu.pipeline_mode<synchronous>, transform_indices = @transform_2, window_bounds = array<i64: 8, 128>}, {pipeline_mode = #tpu.pipeline_mode<synchronous>, transform_indices = @transform_3, window_bounds = array<i64: 1, 128>}, {pipeline_mode = #tpu.pipeline_mode<synchronous>, transform_indices = @transform_4, window_bounds = array<i64: 128, 128>}, {pipeline_mode = #tpu.pipeline_mode<synchronous>, transform_indices = @transform_5, window_bounds = array<i64: 1, 128>}, {pipeline_mode = #tpu.pipeline_mode<synchronous>, transform_indices = @transform_6, window_bounds = array<i64: 128, 128>}, {pipeline_mode = #tpu.pipeline_mode<synchronous>, transform_indices = @transform_7, window_bounds = array<i64: 1, 128>}, {pipeline_mode = #tpu.pipeline_mode<synchronous>, transform_indices = @transform_8, window_bounds = array<i64: 4, 128>}, {pipeline_mode = #tpu.pipeline_mode<synchronous>, transform_indices = @transform_9, window_bounds = array<i64: 4, 1>}, {transform_indices = @transform_10, window_bounds = array<i64: 1, 4, 8>}]} {
    %c0 = arith.constant 0 : index
    %c0_0 = arith.constant 0 : index
    %c0_1 = arith.constant 0 : index
    %0 = vector.load %arg2[%c0, %c0_0, %c0_1] : memref<1x8x8xf32, #tpu.memory_space<vmem>>, vector<1x8x8xf32>
    %1 = vector.shape_cast %0 : vector<1x8x8xf32> to vector<8x8xf32>
    %2 = arith.truncf %1 : vector<8x8xf32> to vector<8x8xbf16>
    %c0_2 = arith.constant 0 : index
    %c0_3 = arith.constant 0 : index
    %c0_4 = arith.constant 0 : index
    %3 = vector.load %arg3[%c0_2, %c0_3, %c0_4] : memref<1x3x128xf32, #tpu.memory_space<vmem>>, vector<1x3x128xf32>
    %4 = vector.shape_cast %3 : vector<1x3x128xf32> to vector<3x128xf32>
    %5 = vector.extract_strided_slice %4 {offsets = [0, 0], sizes = [1, 128], strides = [1, 1]} : vector<3x128xf32> to vector<1x128xf32>
    %6 = vector.extract_strided_slice %4 {offsets = [1, 0], sizes = [1, 128], strides = [1, 1]} : vector<3x128xf32> to vector<1x128xf32>
    %7 = vector.extract_strided_slice %4 {offsets = [2, 0], sizes = [1, 128], strides = [1, 1]} : vector<3x128xf32> to vector<1x128xf32>
    %c0_5 = arith.constant 0 : index
    %c0_6 = arith.constant 0 : index
    %8 = vector.load %arg4[%c0_5, %c0_6] : memref<8x128xbf16, #tpu.memory_space<vmem>>, vector<8x128xbf16>
    %cst = arith.constant dense<0.000000e+00> : vector<8x128xf32>
    %9 = tpu.matmul %2, %8, %cst {dimension_numbers = #tpu.dot_dimension_numbers<[1], [0], [0], [1], [0, 0, 1, 1], [], []>} : vector<8x8xbf16>, vector<8x128xbf16>, vector<8x128xf32> -> vector<8x128xf32>
    %c0_7 = arith.constant 0 : index
    %c0_8 = arith.constant 0 : index
    %10 = vector.load %arg5[%c0_7, %c0_8] : memref<1x128xf32, #tpu.memory_space<vmem>>, vector<1x128xf32>
    %11 = vector.broadcast %10 : vector<1x128xf32> to vector<8x128xf32>
    %12 = arith.addf %9, %11 : vector<8x128xf32>
    %13 = vector.broadcast %5 : vector<1x128xf32> to vector<8x128xf32>
    %14 = arith.mulf %13, %12 : vector<8x128xf32>
    %cst_9 = arith.constant 2.000000e+01 : f32
    %15 = vector.broadcast %cst_9 : f32 to vector<8x128xf32>
    %16 = arith.cmpf ogt, %14, %15 : vector<8x128xf32>
    %17 = math.exp %14 : vector<8x128xf32>
    %18 = math.log1p %17 : vector<8x128xf32>
    %19 = arith.select %16, %14, %18 : vector<8x128xi1>, vector<8x128xf32>
    %20 = arith.truncf %19 : vector<8x128xf32> to vector<8x128xbf16>
    %c0_10 = arith.constant 0 : index
    %c0_11 = arith.constant 0 : index
    %21 = vector.load %arg6[%c0_10, %c0_11] : memref<128x128xbf16, #tpu.memory_space<vmem>>, vector<128x128xbf16>
    %cst_12 = arith.constant dense<0.000000e+00> : vector<8x128xf32>
    %22 = tpu.matmul %20, %21, %cst_12 {dimension_numbers = #tpu.dot_dimension_numbers<[1], [0], [0], [1], [0, 0, 1, 1], [], []>} : vector<8x128xbf16>, vector<128x128xbf16>, vector<8x128xf32> -> vector<8x128xf32>
    %c0_13 = arith.constant 0 : index
    %c0_14 = arith.constant 0 : index
    %23 = vector.load %arg7[%c0_13, %c0_14] : memref<1x128xf32, #tpu.memory_space<vmem>>, vector<1x128xf32>
    %24 = vector.broadcast %23 : vector<1x128xf32> to vector<8x128xf32>
    %25 = arith.addf %22, %24 : vector<8x128xf32>
    %26 = vector.broadcast %6 : vector<1x128xf32> to vector<8x128xf32>
    %27 = arith.mulf %26, %25 : vector<8x128xf32>
    %cst_15 = arith.constant 2.000000e+01 : f32
    %28 = vector.broadcast %cst_15 : f32 to vector<8x128xf32>
    %29 = arith.cmpf ogt, %27, %28 : vector<8x128xf32>
    %30 = math.exp %27 : vector<8x128xf32>
    %31 = math.log1p %30 : vector<8x128xf32>
    %32 = arith.select %29, %27, %31 : vector<8x128xi1>, vector<8x128xf32>
    %33 = arith.truncf %32 : vector<8x128xf32> to vector<8x128xbf16>
    %c0_16 = arith.constant 0 : index
    %c0_17 = arith.constant 0 : index
    %34 = vector.load %arg8[%c0_16, %c0_17] : memref<128x128xbf16, #tpu.memory_space<vmem>>, vector<128x128xbf16>
    %cst_18 = arith.constant dense<0.000000e+00> : vector<8x128xf32>
    %35 = tpu.matmul %33, %34, %cst_18 {dimension_numbers = #tpu.dot_dimension_numbers<[1], [0], [0], [1], [0, 0, 1, 1], [], []>} : vector<8x128xbf16>, vector<128x128xbf16>, vector<8x128xf32> -> vector<8x128xf32>
    %c0_19 = arith.constant 0 : index
    %c0_20 = arith.constant 0 : index
    %36 = vector.load %arg9[%c0_19, %c0_20] : memref<1x128xf32, #tpu.memory_space<vmem>>, vector<1x128xf32>
    %37 = vector.broadcast %36 : vector<1x128xf32> to vector<8x128xf32>
    %38 = arith.addf %35, %37 : vector<8x128xf32>
    %39 = vector.broadcast %7 : vector<1x128xf32> to vector<8x128xf32>
    %40 = arith.mulf %39, %38 : vector<8x128xf32>
    %cst_21 = arith.constant 2.000000e+01 : f32
    %41 = vector.broadcast %cst_21 : f32 to vector<8x128xf32>
    %42 = arith.cmpf ogt, %40, %41 : vector<8x128xf32>
    %43 = math.exp %40 : vector<8x128xf32>
    %44 = math.log1p %43 : vector<8x128xf32>
    %45 = arith.select %42, %40, %44 : vector<8x128xi1>, vector<8x128xf32>
    %c0_22 = arith.constant 0 : index
    %c0_23 = arith.constant 0 : index
    %46 = vector.load %arg10[%c0_22, %c0_23] : memref<4x128xbf16, #tpu.memory_space<vmem>>, vector<4x128xbf16>
    %47 = arith.truncf %45 : vector<8x128xf32> to vector<8x128xbf16>
    %cst_24 = arith.constant dense<0.000000e+00> : vector<4x8xf32>
    %48 = tpu.matmul %46, %47, %cst_24 {dimension_numbers = #tpu.dot_dimension_numbers<[1], [1], [0], [0], [0, 0, 1, 0], [], []>} : vector<4x128xbf16>, vector<8x128xbf16>, vector<4x8xf32> -> vector<4x8xf32>
    %c0_25 = arith.constant 0 : index
    %c0_26 = arith.constant 0 : index
    %49 = vector.load %arg11[%c0_25, %c0_26] : memref<4x1xf32, #tpu.memory_space<vmem>>, vector<4x1xf32>
    %50 = vector.broadcast %49 : vector<4x1xf32> to vector<4x8xf32>
    %51 = arith.addf %48, %50 : vector<4x8xf32>
    %c0_27 = arith.constant 0 : index
    %c0_28 = arith.constant 0 : index
    %c0_29 = arith.constant 0 : index
    %52 = vector.load %arg12[%c0_27, %c0_28, %c0_29] : memref<1x4x8xf32, #tpu.memory_space<vmem>>, vector<1x4x8xf32>
    %53 = vector.shape_cast %52 : vector<1x4x8xf32> to vector<4x8xf32>
    %54 = vector.shape_cast %51 : vector<4x8xf32> to vector<1x4x8xf32>
    tpu.vector_store %arg12[%c0_27, %c0_28, %c0_29], %54 {strides = array<i32>} : memref<1x4x8xf32, #tpu.memory_space<vmem>>, vector<1x4x8xf32>,
    return
  }
  func.func @transform_0(%arg0: i32, %arg1: i32) -> (i32, i32, i32) {
    %c0_i32 = arith.constant 0 : i32
    %c0_i32_0 = arith.constant 0 : i32
    return %arg0, %arg1, %c0_i32 : i32, i32, i32
  }
  func.func @transform_1(%arg0: i32, %arg1: i32) -> (i32, i32, i32) {
    %c0_i32 = arith.constant 0 : i32
    %c0_i32_0 = arith.constant 0 : i32
    %c0_i32_1 = arith.constant 0 : i32
    return %arg0, %c0_i32, %c0_i32_0 : i32, i32, i32
  }
  func.func @transform_2(%arg0: i32, %arg1: i32) -> (i32, i32) {
    %c0_i32 = arith.constant 0 : i32
    %c0_i32_0 = arith.constant 0 : i32
    %c0_i32_1 = arith.constant 0 : i32
    return %c0_i32, %c0_i32_0 : i32, i32
  }
  func.func @transform_3(%arg0: i32, %arg1: i32) -> (i32, i32) {
    %c0_i32 = arith.constant 0 : i32
    %c0_i32_0 = arith.constant 0 : i32
    %c0_i32_1 = arith.constant 0 : i32
    return %c0_i32, %c0_i32_0 : i32, i32
  }
  func.func @transform_4(%arg0: i32, %arg1: i32) -> (i32, i32) {
    %c0_i32 = arith.constant 0 : i32
    %c0_i32_0 = arith.constant 0 : i32
    %c0_i32_1 = arith.constant 0 : i32
    return %c0_i32, %c0_i32_0 : i32, i32
  }
  func.func @transform_5(%arg0: i32, %arg1: i32) -> (i32, i32) {
    %c0_i32 = arith.constant 0 : i32
    %c0_i32_0 = arith.constant 0 : i32
    %c0_i32_1 = arith.constant 0 : i32
    return %c0_i32, %c0_i32_0 : i32, i32
  }
  func.func @transform_6(%arg0: i32, %arg1: i32) -> (i32, i32) {
    %c0_i32 = arith.constant 0 : i32
    %c0_i32_0 = arith.constant 0 : i32
    %c0_i32_1 = arith.constant 0 : i32
    return %c0_i32, %c0_i32_0 : i32, i32
  }
  func.func @transform_7(%arg0: i32, %arg1: i32) -> (i32, i32) {
    %c0_i32 = arith.constant 0 : i32
    %c0_i32_0 = arith.constant 0 : i32
    %c0_i32_1 = arith.constant 0 : i32
    return %c0_i32, %c0_i32_0 : i32, i32
  }
  func.func @transform_8(%arg0: i32, %arg1: i32) -> (i32, i32) {
    %c0_i32 = arith.constant 0 : i32
    %c0_i32_0 = arith.constant 0 : i32
    %c0_i32_1 = arith.constant 0 : i32
    return %c0_i32, %c0_i32_0 : i32, i32
  }
  func.func @transform_9(%arg0: i32, %arg1: i32) -> (i32, i32) {
    %c0_i32 = arith.constant 0 : i32
    %c0_i32_0 = arith.constant 0 : i32
    %c0_i32_1 = arith.constant 0 : i32
    return %c0_i32, %c0_i32_0 : i32, i32
  }
  func.func @transform_10(%arg0: i32, %arg1: i32) -> (i32, i32, i32) {
    %c0_i32 = arith.constant 0 : i32
    %c0_i32_0 = arith.constant 0 : i32
    return %arg0, %c0_i32, %arg1 : i32, i32, i32
  }
}

</mosaic_0001>

<llo_original>
// kernel: tpu_custom_call.1
$region0: #{tpu_custom_call.1}
  #allocation0 [shape = 'u32[]', space=smem, size = 0x4, offset = 0x4, fixed_abs, tag = 'smem constant byte address 0x4 - core index']
  #allocation1 [shape = 'u32[72,128]{1,0:T(1,128)}', space=vmem, size = 0x9000, scoped, tag = 'internal scratch']
  %s0 = inlined_call_operand.vmem [shape: f32[2,8,8], index: 0, kind: input, shape index: {}]
  %s1 = inlined_call_operand.vmem [shape: f32[2,3,128], index: 1, kind: input, shape index: {}]
  %s2 = inlined_call_operand.vmem [shape: bf16[8,128], index: 2, kind: input, shape index: {}]
  %s3 = inlined_call_operand.hbm [shape: f32[1,128], index: 3, kind: input, shape index: {}]
  %s4 = inlined_call_operand.hbm [shape: bf16[128,128], index: 4, kind: input, shape index: {}]
  %s5 = inlined_call_operand.hbm [shape: f32[1,128], index: 5, kind: input, shape index: {}]
  %s6 = inlined_call_operand.hbm [shape: bf16[128,128], index: 6, kind: input, shape index: {}]
  %s7 = inlined_call_operand.vmem [shape: f32[1,128], index: 7, kind: input, shape index: {}]
  %s8 = inlined_call_operand.vmem [shape: bf16[4,128], index: 8, kind: input, shape index: {}]
  %s9 = inlined_call_operand.vmem [shape: f32[4,1], index: 9, kind: input, shape index: {}]
  %s10 = inlined_call_operand.hbm [shape: f32[2,4,8], index: 10, kind: output, shape index: {}]
  %s11 = sld [smem:[#allocation0]]
  $region89: #{tpu_custom_call.1} parent=0
    _
  %s13 = ssub.s32 1, %s11
  %s14 = scalar_select 0, %s13, %s11
  $region1: #{tpu_custom_call.1} parent=0
    #allocation2 [shape = 'u8[512]{0}', space=vmem, size = 0x400, scoped, tag = 'input window, operand 3, single buffered']
    #allocation3 [shape = 's32[2]{0}', space=sflag, size = 0x8, scoped, tag = 'scoped memory for tpu_custom_call.1']
    #allocation4 [shape = 's32[2]{0}', space=sflag, size = 0x8, scoped, tag = 'scoped memory for tpu_custom_call.1']
    #allocation5 [shape = 'u8[32768]{0}', space=vmem, size = 0x8000, scoped, tag = 'input window, operand 4, single buffered']
    #allocation6 [shape = 's32[1]{0}', space=sflag, size = 0x4, scoped, tag = 'scoped memory for tpu_custom_call.1']
    #allocation7 [shape = 'u8[512]{0}', space=vmem, size = 0x400, scoped, tag = 'input window, operand 5, single buffered']
    #allocation8 [shape = 'u8[32768]{0}', space=vmem, size = 0x8000, scoped, tag = 'input window, operand 6, single buffered']
    #allocation9 [shape = 's32[1]{0}', space=sflag, size = 0x4, scoped, tag = 'scoped memory for tpu_custom_call.1']
    #allocation10 [shape = 'u8[4096]{0}', space=vmem, size = 0x1000, scoped, tag = 'output window, operand 0']
    %15 = vsyncpa [#allocation3], 0
    %16 = vsyncpa [#allocation6], 0
    %17 = vsyncpa [#allocation9], 0
    %18 = vsyncpa [#allocation4], 0
    %s19 = scalar_lea.sflag [#allocation4], 1
    %20 = vsyncpa %s19, 0
    loop: start=0, step=1, limit=4
    $region2: #{tpu_custom_call.1} parent=1 // loop_pre_header
      _
    $region3: #{tpu_custom_call.1} parent=1 // loop_header
      %s22 = sphi 0, %s26
      %p23 = scmp.ge.s32.totalorder %s22, 4
      %s29 = sphi 0, %s41
      %s30 = sphi 0, %s37
      %s31 = sphi 0, %s29
      %s32 = sphi 0, %s30
      %s33 = sphi 0, %s31
      %s34 = sphi 0, %s32
      %s46 = sphi 0, %s48
      %s49 = sphi 0, %s46
      %s50 = sphi 0, %s49
      %s66 = sphi 0, %s50
      %s72 = sphi 0, %s74
      %s75 = sphi 0, %s72
      %s76 = sphi 0, %s75
      %s92 = sphi 0, %s76
      %s96 = sphi 0, %s96
      %s98 = sphi 0, %s96
      %s99 = sphi 0, %s98
      %s113 = sphi 0, %s99
      %s117 = sphi 0, %s117
      %s119 = sphi 0, %s117
      %s120 = sphi 0, %s119
      %s134 = sphi 0, %s120
      %s138 = sphi 0, %s138
      %s140 = sphi 0, %s138
      %s141 = sphi 0, %s140
      %s155 = sphi 0, %s141
      %s159 = sphi 0, %s159
      %s161 = sphi 0, %s159
      %s162 = sphi 0, %s161
      %s176 = sphi 0, %s162
      %s180 = sphi 0, %s180
      %s182 = sphi 0, %s180
      %s183 = sphi 0, %s182
      %s197 = sphi 0, %s183
      %s201 = sphi 0, %s201
      %s203 = sphi 0, %s201
      %s204 = sphi 0, %s203
      %s218 = sphi 0, %s204
      %s222 = sphi 0, %s222
      %s224 = sphi 0, %s222
      %s225 = sphi 0, %s224
      %s239 = sphi 0, %s225
      %s243 = sphi 0, %s243
      %s245 = sphi 0, %s243
      %s246 = sphi 0, %s245
      %s260 = sphi 0, %s246
      %s268 = sphi 0, %s270
      %s271 = sphi 0, %s268
      %s272 = sphi 0, %s271
      %s288 = sphi 0, %s272
    $region4: #{tpu_custom_call.1} parent=1 // loop_header_branch
      %25 = sbr.rel (%p23) target = $region8
    $region5: #{tpu_custom_call.1} parent=1 // loop_body
      %s27 = ssub.s32 %s22, 1
      %s28 = ssub.s32 %s22, 2
      %s35 = sadd.s32 1, %s30
      %p36 = scmp.ge.s32.totalorder %s35, 1
      %s37 = scalar_select %p36, 0, %s35
      %s38 = sadd.s32 1, %s29
      %s39 = scalar_select %p36, %s38, %s29
      %p40 = scmp.ge.s32.totalorder %s39, 2
      %s41 = scalar_select %p40, 0, %s39
      %s42 = ssub.s32 %s29, %s41
      %s43 = ssub.s32 %s30, %s37
      %s44 = sor.u32 %s42, %s43
      %p45 = scmp.eq.s32.totalorder %s44, 0
      %s47 = sadd.s32 %s46, 1
      %s48 = scalar_select %p45, %s46, %s47
      %p51 = pneg %p45
      %p52 = scmp.eq.s32.totalorder %s22, 1
      %p53 = por %p51, %p52
      %p54 = scmp.ne.s32.totalorder %s46, %s49
      %p55 = scmp.eq.s32.totalorder %s22, 0
      %p56 = por %p54, %p55
      %p57 = scmp.ne.s32.totalorder %s46, %s49
      %p58 = scmp.eq.s32.totalorder %s27, 1
      %p59 = por %p57, %p58
      %p60 = scmp.ne.s32.totalorder %s49, %s50
      %p61 = scmp.eq.s32.totalorder %s27, 0
      %p62 = por %p60, %p61
      %p63 = scmp.ne.s32.totalorder %s49, %s50
      %p64 = scmp.eq.s32.totalorder %s28, 1
      %p65 = por %p63, %p64
      %p67 = scmp.ne.s32.totalorder %s50, %s66
      %p68 = scmp.eq.s32.totalorder %s28, 0
      %p69 = por %p67, %p68
      %s70 = ssub.s32 %s29, %s41
      %p71 = scmp.eq.s32.totalorder %s70, 0
      %s73 = sadd.s32 %s72, 1
      %s74 = scalar_select %p71, %s72, %s73
      %p77 = pneg %p71
      %p78 = scmp.eq.s32.totalorder %s22, 1
      %p79 = por %p77, %p78
      %p80 = scmp.ne.s32.totalorder %s72, %s75
      %p81 = scmp.eq.s32.totalorder %s22, 0
      %p82 = por %p80, %p81
      %p83 = scmp.ne.s32.totalorder %s72, %s75
      %p84 = scmp.eq.s32.totalorder %s27, 1
      %p85 = por %p83, %p84
      %p86 = scmp.ne.s32.totalorder %s75, %s76
      %p87 = scmp.eq.s32.totalorder %s27, 0
      %p88 = por %p86, %p87
      %p89 = scmp.ne.s32.totalorder %s75, %s76
      %p90 = scmp.eq.s32.totalorder %s28, 1
      %p91 = por %p89, %p90
      %p93 = scmp.ne.s32.totalorder %s76, %s92
      %p94 = scmp.eq.s32.totalorder %s28, 0
      %p95 = por %p93, %p94
      %s97 = sadd.s32 %s96, 1
      %p100 = scmp.eq.s32.totalorder %s22, 1
      %p101 = scmp.ne.s32.totalorder %s96, %s98
      %p102 = scmp.eq.s32.totalorder %s22, 0
      %p103 = por %p101, %p102
      %p104 = scmp.ne.s32.totalorder %s96, %s98
      %p105 = scmp.eq.s32.totalorder %s27, 1
      %p106 = por %p104, %p105
      %p107 = scmp.ne.s32.totalorder %s98, %s99
      %p108 = scmp.eq.s32.totalorder %s27, 0
      %p109 = por %p107, %p108
      %p110 = scmp.ne.s32.totalorder %s98, %s99
      %p111 = scmp.eq.s32.totalorder %s28, 1
      %p112 = por %p110, %p111
      %p114 = scmp.ne.s32.totalorder %s99, %s113
      %p115 = scmp.eq.s32.totalorder %s28, 0
      %p116 = por %p114, %p115
      %s118 = sadd.s32 %s117, 1
      %p121 = scmp.eq.s32.totalorder %s22, 1
      %p122 = scmp.ne.s32.totalorder %s117, %s119
      %p123 = scmp.eq.s32.totalorder %s22, 0
      %p124 = por %p122, %p123
      %p125 = scmp.ne.s32.totalorder %s117, %s119
      %p126 = scmp.eq.s32.totalorder %s27, 1
      %p127 = por %p125, %p126
      %p128 = scmp.ne.s32.totalorder %s119, %s120
      %p129 = scmp.eq.s32.totalorder %s27, 0
      %p130 = por %p128, %p129
      %p131 = scmp.ne.s32.totalorder %s119, %s120
      %p132 = scmp.eq.s32.totalorder %s28, 1
      %p133 = por %p131, %p132
      %p135 = scmp.ne.s32.totalorder %s120, %s134
      %p136 = scmp.eq.s32.totalorder %s28, 0
      %p137 = por %p135, %p136
      %s139 = sadd.s32 %s138, 1
      %p142 = scmp.eq.s32.totalorder %s22, 1
      %p143 = scmp.ne.s32.totalorder %s138, %s140
      %p144 = scmp.eq.s32.totalorder %s22, 0
      %p145 = por %p143, %p144
      %p146 = scmp.ne.s32.totalorder %s138, %s140
      %p147 = scmp.eq.s32.totalorder %s27, 1
      %p148 = por %p146, %p147
      %p149 = scmp.ne.s32.totalorder %s140, %s141
      %p150 = scmp.eq.s32.totalorder %s27, 0
      %p151 = por %p149, %p150
      %p152 = scmp.ne.s32.totalorder %s140, %s141
      %p153 = scmp.eq.s32.totalorder %s28, 1
      %p154 = por %p152, %p153
      %p156 = scmp.ne.s32.totalorder %s141, %s155
      %p157 = scmp.eq.s32.totalorder %s28, 0
      %p158 = por %p156, %p157
      %s160 = sadd.s32 %s159, 1
      %p163 = scmp.eq.s32.totalorder %s22, 1
      %p164 = scmp.ne.s32.totalorder %s159, %s161
      %p165 = scmp.eq.s32.totalorder %s22, 0
      %p166 = por %p164, %p165
      %p167 = scmp.ne.s32.totalorder %s159, %s161
      %p168 = scmp.eq.s32.totalorder %s27, 1
      %p169 = por %p167, %p168
      %p170 = scmp.ne.s32.totalorder %s161, %s162
      %p171 = scmp.eq.s32.totalorder %s27, 0
      %p172 = por %p170, %p171
      %p173 = scmp.ne.s32.totalorder %s161, %s162
      %p174 = scmp.eq.s32.totalorder %s28, 1
      %p175 = por %p173, %p174
      %p177 = scmp.ne.s32.totalorder %s162, %s176
      %p178 = scmp.eq.s32.totalorder %s28, 0
      %p179 = por %p177, %p178
      %s181 = sadd.s32 %s180, 1
      %p184 = scmp.eq.s32.totalorder %s22, 1
      %p185 = scmp.ne.s32.totalorder %s180, %s182
      %p186 = scmp.eq.s32.totalorder %s22, 0
      %p187 = por %p185, %p186
      %p188 = scmp.ne.s32.totalorder %s180, %s182
      %p189 = scmp.eq.s32.totalorder %s27, 1
      %p190 = por %p188, %p189
      %p191 = scmp.ne.s32.totalorder %s182, %s183
      %p192 = scmp.eq.s32.totalorder %s27, 0
      %p193 = por %p191, %p192
      %p194 = scmp.ne.s32.totalorder %s182, %s183
      %p195 = scmp.eq.s32.totalorder %s28, 1
      %p196 = por %p194, %p195
      %p198 = scmp.ne.s32.totalorder %s183, %s197
      %p199 = scmp.eq.s32.totalorder %s28, 0
      %p200 = por %p198, %p199
      %s202 = sadd.s32 %s201, 1
      %p205 = scmp.eq.s32.totalorder %s22, 1
      %p206 = scmp.ne.s32.totalorder %s201, %s203
      %p207 = scmp.eq.s32.totalorder %s22, 0
      %p208 = por %p206, %p207
      %p209 = scmp.ne.s32.totalorder %s201, %s203
      %p210 = scmp.eq.s32.totalorder %s27, 1
      %p211 = por %p209, %p210
      %p212 = scmp.ne.s32.totalorder %s203, %s204
      %p213 = scmp.eq.s32.totalorder %s27, 0
      %p214 = por %p212, %p213
      %p215 = scmp.ne.s32.totalorder %s203, %s204
      %p216 = scmp.eq.s32.totalorder %s28, 1
      %p217 = por %p215, %p216
      %p219 = scmp.ne.s32.totalorder %s204, %s218
      %p220 = scmp.eq.s32.totalorder %s28, 0
      %p221 = por %p219, %p220
      %s223 = sadd.s32 %s222, 1
      %p226 = scmp.eq.s32.totalorder %s22, 1
      %p227 = scmp.ne.s32.totalorder %s222, %s224
      %p228 = scmp.eq.s32.totalorder %s22, 0
      %p229 = por %p227, %p228
      %p230 = scmp.ne.s32.totalorder %s222, %s224
      %p231 = scmp.eq.s32.totalorder %s27, 1
      %p232 = por %p230, %p231
      %p233 = scmp.ne.s32.totalorder %s224, %s225
      %p234 = scmp.eq.s32.totalorder %s27, 0
      %p235 = por %p233, %p234
      %p236 = scmp.ne.s32.totalorder %s224, %s225
      %p237 = scmp.eq.s32.totalorder %s28, 1
      %p238 = por %p236, %p237
      %p240 = scmp.ne.s32.totalorder %s225, %s239
      %p241 = scmp.eq.s32.totalorder %s28, 0
      %p242 = por %p240, %p241
      %s244 = sadd.s32 %s243, 1
      %p247 = scmp.eq.s32.totalorder %s22, 1
      %p248 = scmp.ne.s32.totalorder %s243, %s245
      %p249 = scmp.eq.s32.totalorder %s22, 0
      %p250 = por %p248, %p249
      %p251 = scmp.ne.s32.totalorder %s243, %s245
      %p252 = scmp.eq.s32.totalorder %s27, 1
      %p253 = por %p251, %p252
      %p254 = scmp.ne.s32.totalorder %s245, %s246
      %p255 = scmp.eq.s32.totalorder %s27, 0
      %p256 = por %p254, %p255
      %p257 = scmp.ne.s32.totalorder %s245, %s246
      %p258 = scmp.eq.s32.totalorder %s28, 1
      %p259 = por %p257, %p258
      %p261 = scmp.ne.s32.totalorder %s246, %s260
      %p262 = scmp.eq.s32.totalorder %s28, 0
      %p263 = por %p261, %p262
      %s264 = ssub.s32 %s29, %s41
      %s265 = ssub.s32 %s30, %s37
      %s266 = sor.u32 %s264, %s265
      %p267 = scmp.eq.s32.totalorder %s266, 0
      %s269 = sadd.s32 %s268, 1
      %s270 = scalar_select %p267, %s268, %s269
      %p273 = pneg %p267
      %p274 = scmp.eq.s32.totalorder %s22, 1
      %p275 = por %p273, %p274
      %p276 = scmp.ne.s32.totalorder %s268, %s271
      %p277 = scmp.eq.s32.totalorder %s22, 0
      %p278 = por %p276, %p277
      %p279 = scmp.ne.s32.totalorder %s268, %s271
      %p280 = scmp.eq.s32.totalorder %s27, 1
      %p281 = por %p279, %p280
      %p282 = scmp.ne.s32.totalorder %s271, %s272
      %p283 = scmp.eq.s32.totalorder %s27, 0
      %p284 = por %p282, %p283
      %p285 = scmp.ne.s32.totalorder %s271, %s272
      %p286 = scmp.eq.s32.totalorder %s28, 1
      %p287 = por %p285, %p286
      %p289 = scmp.ne.s32.totalorder %s272, %s288
      %p290 = scmp.eq.s32.totalorder %s28, 0
      %p291 = por %p289, %p290
      %p292 = scmp.le.s32.totalorder 1, %s22
      %p293 = scmp.lt.s32.totalorder %s22, 3
      %p294 = pnand %p292, %p293
      %p295 = pneg %p294
      // Predicated region
      $region9: #{tpu_custom_call.1} parent=5 // pred_check
        _
      $region10: #{tpu_custom_call.1} parent=5 // pred_check_branch
        %297 = sbr.rel (%p294) target = $region12
      $region11: #{tpu_custom_call.1} parent=5 // pred_region
        %s298 = ssub.s32 %s22, 1
        // Predicated region
        $region13: #{tpu_custom_call.1} parent=11 // pred_check
          %p299 = pneg %p109
        $region14: #{tpu_custom_call.1} parent=11 // pred_check_branch
          %301 = sbr.rel (%p299) target = $region16
        $region15: #{tpu_custom_call.1} parent=11 // pred_region
          _
        $region16: #{tpu_custom_call.1} parent=11 // pred_fallthru
          _
        // Predicated region
        $region17: #{tpu_custom_call.1} parent=11 // pred_check
          %p302 = pneg %p130
        $region18: #{tpu_custom_call.1} parent=11 // pred_check_branch
          %304 = sbr.rel (%p302) target = $region20
        $region19: #{tpu_custom_call.1} parent=11 // pred_region
          %306 = vsyncadd [#allocation3], 0
          %s308 = sshll.u32 %s3, 4
          %s309 = int_to_ptr.hbm [resolvable:$true] %s308
          %s310 = sshll.u32 [#allocation2], 4
          %s311 = int_to_ptr.vmem [resolvable:$true] %s310
          %313 = dma.hbm_to_vmem [thread:$0]  %s309, 16, %s311, [#allocation3]
        $region20: #{tpu_custom_call.1} parent=11 // pred_fallthru
          _
        // Predicated region
        $region21: #{tpu_custom_call.1} parent=11 // pred_check
          %p314 = pneg %p151
        $region22: #{tpu_custom_call.1} parent=11 // pred_check_branch
          %316 = sbr.rel (%p314) target = $region24
        $region23: #{tpu_custom_call.1} parent=11 // pred_region
          %318 = vsyncadd [#allocation6], 0
          %s319 = sshll.u32 %s4, 4
          %s320 = int_to_ptr.hbm [resolvable:$true] %s319
          %s321 = sshll.u32 [#allocation5], 4
          %s322 = int_to_ptr.vmem [resolvable:$true] %s321
          %327 = dma.hbm_to_vmem [thread:$0]  %s320, 1024, %s322, [#allocation6], 64, 64, 4
        $region24: #{tpu_custom_call.1} parent=11 // pred_fallthru
          _
        // Predicated region
        $region25: #{tpu_custom_call.1} parent=11 // pred_check
          %p328 = pneg %p172
        $region26: #{tpu_custom_call.1} parent=11 // pred_check_branch
          %330 = sbr.rel (%p328) target = $region28
        $region27: #{tpu_custom_call.1} parent=11 // pred_region
          %332 = vsyncadd [#allocation6], 0
          %s334 = sshll.u32 %s5, 4
          %s335 = int_to_ptr.hbm [resolvable:$true] %s334
          %s336 = sshll.u32 [#allocation7], 4
          %s337 = int_to_ptr.vmem [resolvable:$true] %s336
          %339 = dma.hbm_to_vmem [thread:$0]  %s335, 16, %s337, [#allocation6]
        $region28: #{tpu_custom_call.1} parent=11 // pred_fallthru
          _
        // Predicated region
        $region29: #{tpu_custom_call.1} parent=11 // pred_check
          %p340 = pneg %p193
        $region30: #{tpu_custom_call.1} parent=11 // pred_check_branch
          %342 = sbr.rel (%p340) target = $region32
        $region31: #{tpu_custom_call.1} parent=11 // pred_region
          %344 = vsyncadd [#allocation9], 0
          %s345 = sshll.u32 %s6, 4
          %s346 = int_to_ptr.hbm [resolvable:$true] %s345
          %s347 = sshll.u32 [#allocation8], 4
          %s348 = int_to_ptr.vmem [resolvable:$true] %s347
          %353 = dma.hbm_to_vmem [thread:$0]  %s346, 1024, %s348, [#allocation9], 64, 64, 4
        $region32: #{tpu_custom_call.1} parent=11 // pred_fallthru
          _
        // Predicated region
        $region33: #{tpu_custom_call.1} parent=11 // pred_check
          %p354 = pneg %p214
        $region34: #{tpu_custom_call.1} parent=11 // pred_check_branch
          %356 = sbr.rel (%p354) target = $region36
        $region35: #{tpu_custom_call.1} parent=11 // pred_region
          _
        $region36: #{tpu_custom_call.1} parent=11 // pred_fallthru
          _
        // Predicated region
        $region37: #{tpu_custom_call.1} parent=11 // pred_check
          %p357 = pneg %p235
        $region38: #{tpu_custom_call.1} parent=11 // pred_check_branch
          %359 = sbr.rel (%p357) target = $region40
        $region39: #{tpu_custom_call.1} parent=11 // pred_region
          _
        $region40: #{tpu_custom_call.1} parent=11 // pred_fallthru
          _
        // Predicated region
        $region41: #{tpu_custom_call.1} parent=11 // pred_check
          %p360 = pneg %p256
        $region42: #{tpu_custom_call.1} parent=11 // pred_check_branch
          %362 = sbr.rel (%p360) target = $region44
        $region43: #{tpu_custom_call.1} parent=11 // pred_region
          _
        $region44: #{tpu_custom_call.1} parent=11 // pred_fallthru
          _
      $region12: #{tpu_custom_call.1} parent=5 // pred_fallthru
        _
      %p363 = scmp.lt.s32.totalorder %s22, 2
      // Predicated region
      $region45: #{tpu_custom_call.1} parent=5 // pred_check
        %p364 = pneg %p363
      $region46: #{tpu_custom_call.1} parent=5 // pred_check_branch
        %366 = sbr.rel (%p364) target = $region48
      $region47: #{tpu_custom_call.1} parent=5 // pred_region
        // Predicated region
        $region49: #{tpu_custom_call.1} parent=47 // pred_check
          %p367 = pneg %p56
        $region50: #{tpu_custom_call.1} parent=47 // pred_check_branch
          %369 = sbr.rel (%p367) target = $region52
        $region51: #{tpu_custom_call.1} parent=47 // pred_region
          %p370 = scmp.lt.s32.totalorder %s29, 1
          %s371 = scalar_select %p370, %s29, 1
          %p372 = scmp.lt.s32.totalorder %s30, 0
          %s373 = scalar_select %p372, %s30, 0
          %s374 = sadd.s32 %s373, %s371
          %s375 = smul.addr %s374, 8
          %s376 = scalar_lea.vmem %s0, %s375
        $region52: #{tpu_custom_call.1} parent=47 // pred_fallthru
          _
        // Predicated region
        $region53: #{tpu_custom_call.1} parent=47 // pred_check
          %p377 = pneg %p82
        $region54: #{tpu_custom_call.1} parent=47 // pred_check_branch
          %379 = sbr.rel (%p377) target = $region56
        $region55: #{tpu_custom_call.1} parent=47 // pred_region
          %p380 = scmp.lt.s32.totalorder %s29, 1
          %s381 = scalar_select %p380, %s29, 1
          %s382 = smul.addr %s381, 4
          %s383 = scalar_lea.vmem %s1, %s382
        $region56: #{tpu_custom_call.1} parent=47 // pred_fallthru
          _
      $region48: #{tpu_custom_call.1} parent=5 // pred_fallthru
        _
      %p384 = scmp.le.s32.totalorder 1, %s22
      %p385 = scmp.lt.s32.totalorder %s22, 3
      %p386 = pnand %p384, %p385
      %p387 = pneg %p386
      // Predicated region
      $region57: #{tpu_custom_call.1} parent=5 // pred_check
        _
      $region58: #{tpu_custom_call.1} parent=5 // pred_check_branch
        %389 = sbr.rel (%p386) target = $region60
      $region59: #{tpu_custom_call.1} parent=5 // pred_region
        %s390 = ssub.s32 %s22, 1
        // Predicated region
        $region61: #{tpu_custom_call.1} parent=59 // pred_check
          %p391 = pneg %p130
        $region62: #{tpu_custom_call.1} parent=59 // pred_check_branch
          %393 = sbr.rel (%p391) target = $region64
        $region63: #{tpu_custom_call.1} parent=59 // pred_region
          %395 = dma.done [#allocation3], 16
        $region64: #{tpu_custom_call.1} parent=59 // pred_fallthru
          _
        // Predicated region
        $region65: #{tpu_custom_call.1} parent=59 // pred_check
          %p396 = pneg %p151
        $region66: #{tpu_custom_call.1} parent=59 // pred_check_branch
          %398 = sbr.rel (%p396) target = $region68
        $region67: #{tpu_custom_call.1} parent=59 // pred_region
          %400 = dma.done [#allocation6], 1024
        $region68: #{tpu_custom_call.1} parent=59 // pred_fallthru
          _
        // Predicated region
        $region69: #{tpu_custom_call.1} parent=59 // pred_check
          %p401 = pneg %p172
        $region70: #{tpu_custom_call.1} parent=59 // pred_check_branch
          %403 = sbr.rel (%p401) target = $region72
        $region71: #{tpu_custom_call.1} parent=59 // pred_region
          %405 = dma.done [#allocation6], 16
        $region72: #{tpu_custom_call.1} parent=59 // pred_fallthru
          _
        // Predicated region
        $region73: #{tpu_custom_call.1} parent=59 // pred_check
          %p406 = pneg %p193
        $region74: #{tpu_custom_call.1} parent=59 // pred_check_branch
          %408 = sbr.rel (%p406) target = $region76
        $region75: #{tpu_custom_call.1} parent=59 // pred_region
          %410 = dma.done [#allocation9], 1024
        $region76: #{tpu_custom_call.1} parent=59 // pred_fallthru
          _
        %p411 = scmp.lt.s32.totalorder %s31, 1
        %s412 = scalar_select %p411, %s31, 1
        %p413 = scmp.lt.s32.totalorder %s32, 0
        %s414 = scalar_select %p413, %s32, 0
        %s415 = sadd.s32 %s414, %s412
        %s416 = smul.addr %s415, 8
        %s417 = scalar_lea.vmem %s0, %s416
        %p418 = pneg %p62
        %p419 = pneg %p59
        %p420 = scmp.lt.s32.totalorder %s31, 1
        %s421 = scalar_select %p420, %s31, 1
        %s422 = smul.addr %s421, 4
        %s423 = scalar_lea.vmem %s1, %s422
        %p424 = pneg %p88
        %p425 = pneg %p85
        %p426 = pneg %p109
        %p427 = pneg %p106
        %p428 = pneg %p130
        %p429 = pneg %p127
        %p430 = pneg %p151
        %p431 = pneg %p148
        %p432 = pneg %p172
        %p433 = pneg %p169
        %p434 = pneg %p193
        %p435 = pneg %p190
        %p436 = pneg %p214
        %p437 = pneg %p211
        %p438 = pneg %p235
        %p439 = pneg %p232
        %p440 = pneg %p256
        %p441 = pneg %p253
        %p442 = pneg %p284
        %p443 = pneg %p281
        %s444 = sand.u32 %s271, 1
        %s445 = scalar_lea.sflag [#allocation4], %s444
        %s446 = sand.u32 %s271, 1
        %s447 = smul.addr %s446, 4
        %s448 = scalar_lea.vmem [#allocation10], %s447
        %p449 = scmp.lt.s32.totalorder %s31, 1
        %s450 = scalar_select %p449, %s31, 1
        %p451 = scmp.lt.s32.totalorder %s32, 0
        %s452 = scalar_select %p451, %s32, 0
        %s453 = sadd.s32 %s452, %s450
        %s454 = smul.addr %s453, 8
        %s455 = scalar_lea.vmem %s0, %s454
        %p456 = scmp.lt.s32.totalorder %s31, 1
        %s457 = scalar_select %p456, %s31, 1
        %s458 = smul.addr %s457, 4
        %s459 = scalar_lea.vmem %s1, %s458
        %v461 = vld [vmem:[%s455] sm:$0xff]
        %v462 = vpack.c.bf16 %v461, %v461
        %v463 = vld [vmem:[%s459] sm:$0x7]
        %v464 = vld [vmem:[%s2] sm:$0xf]
        %v465 = vld [vmem:[#allocation2] sm:$0x1]
        %v467 = vperm.slane %v465, 0
        %vm469 = vcmask 64512
        %v471 = vsel %vm469, %v462, 0
        %vm473 = vcmask 1043456
        %v475 = vsel %vm473, %v464, 0
        %477 = vmatpush.bf16.msra.mxu0 0
        %478 = vmatpush.bf16.msra.mxu0 0
        %479 = vmatpush.bf16.msra.mxu0 0
        %480 = vmatpush.bf16.msra.mxu0 0
        %481 = vmatpush.bf16.msra.mxu0 0
        %482 = vmatpush.bf16.msra.mxu0 0
        %483 = vmatpush.bf16.msra.mxu0 0
        %484 = vmatpush.bf16.msra.mxu0 %v475
        %485 = vmatmul.bf16.gmra.mxu0 %v471
        %v486 = vpop.f32.mrf.mxu0
        %v487 = vadd.f32 %v467, %v486
        %v488 = vpop.f32.mrf.mxu0
        %489 = vdwg.mxu0
        %v490 = vperm.slane %v463, 0
        %v491 = vmul.f32 %v490, %v487
        %vm492 = vcmp.gt.f32.partialorder %v491, 20.0
        %v493 = vmul.f32 %v491, 1.442695
        %v494 = vpow.pop %v493
        %v495 = vadd.f32 %v494, 1.0
        %v496 = vlog2.pop %v495
        %v497 = vmul.f32 %v496, 0.6931472
        %v498 = vmul.f32 -0.5, %v494
        %v499 = vadd.f32 %v498, 1.0
        %v500 = vmul.f32 %v499, %v494
        %v501 = vand.u32 2147483647, %v494
        %vm502 = vcmp.lt.f32.partialorder %v501, 0.0004427343
        %v503 = vsel %vm502, %v500, %v497
        %v504 = vsel %vm492, %v491, %v503
        %v505 = vpack.c.bf16 %v504, %v504
        %v506 = vld [vmem:[#allocation5] sm:$0xf]
        %v507 = vld [vmem:[#allocation5 + $0x4] sm:$0xf]
        %v508 = vld [vmem:[#allocation5 + $0x8] sm:$0xf]
        %v509 = vld [vmem:[#allocation5 + $0xc] sm:$0xf]
        %v510 = vld [vmem:[#allocation5 + $0x10] sm:$0xf]
        %v511 = vld [vmem:[#allocation5 + $0x14] sm:$0xf]
        %v512 = vld [vmem:[#allocation5 + $0x18] sm:$0xf]
        %v513 = vld [vmem:[#allocation5 + $0x1c] sm:$0xf]
        %v514 = vld [vmem:[#allocation5 + $0x20] sm:$0xf]
        %v515 = vld [vmem:[#allocation5 + $0x24] sm:$0xf]
        %v516 = vld [vmem:[#allocation5 + $0x28] sm:$0xf]
        %v517 = vld [vmem:[#allocation5 + $0x2c] sm:$0xf]
        %v518 = vld [vmem:[#allocation5 + $0x30] sm:$0xf]
        %v519 = vld [vmem:[#allocation5 + $0x34] sm:$0xf]
        %v520 = vld [vmem:[#allocation5 + $0x38] sm:$0xf]
        %v521 = vld [vmem:[#allocation5 + $0x3c] sm:$0xf]
        %v522 = vld [vmem:[#allocation7] sm:$0x1]
        %v524 = vperm.slane %v522, 0
        %v542 = vunpack.c.l.b16 %v506
        %v543 = vunpack.c.l.b16 %v507
        %v544 = vunpack.c.l.b16 %v508
        %v545 = vunpack.c.l.b16 %v509
        %v546 = vunpack.c.l.b16 %v510
        %v547 = vunpack.c.l.b16 %v511
        %v548 = vunpack.c.l.b16 %v512
        %v549 = vunpack.c.l.b16 %v513
        %v550 = vunpack.c.l.b16 %v514
        %v551 = vunpack.c.l.b16 %v515
        %v552 = vunpack.c.l.b16 %v516
        %v553 = vunpack.c.l.b16 %v517
        %v554 = vunpack.c.l.b16 %v518
        %v555 = vunpack.c.l.b16 %v519
        %v556 = vunpack.c.l.b16 %v520
        %v557 = vunpack.c.l.b16 %v521
        %v558 = vpack.c.b16 %v543, %v542
        %v559 = vpack.c.b16 %v545, %v544
        %v560 = vpack.c.b16 %v547, %v546
        %v561 = vpack.c.b16 %v549, %v548
        %v562 = vpack.c.b16 %v551, %v550
        %v563 = vpack.c.b16 %v553, %v552
        %v564 = vpack.c.b16 %v555, %v554
        %v565 = vpack.c.b16 %v557, %v556
        %574 = vmatpush.bf16.msra.mxu0 %v565
        %575 = vmatpush.bf16.msra.mxu0 %v564
        %576 = vmatpush.bf16.msra.mxu0 %v563
        %577 = vmatpush.bf16.msra.mxu0 %v562
        %578 = vmatpush.bf16.msra.mxu0 %v561
        %579 = vmatpush.bf16.msra.mxu0 %v560
        %580 = vmatpush.bf16.msra.mxu0 %v559
        %581 = vmatpush.bf16.msra.mxu0 %v558
        %582 = vmatmul.bf16.gmra.mxu0 %v505
        %v583 = vpop.f32.mrf.mxu0
        %v584 = vadd.f32 %v524, %v583
        %v585 = vpop.f32.mrf.mxu0
        %586 = vdwg.mxu0
        %v587 = vperm.slane %v463, 1
        %v588 = vmul.f32 %v587, %v584
        %vm589 = vcmp.gt.f32.partialorder %v588, 20.0
        %v590 = vmul.f32 %v588, 1.442695
        %v591 = vpow.pop %v590
        %v592 = vadd.f32 %v591, 1.0
        %v593 = vlog2.pop %v592
        %v594 = vmul.f32 %v593, 0.6931472
        %v595 = vmul.f32 -0.5, %v591
        %v596 = vadd.f32 %v595, 1.0
        %v597 = vmul.f32 %v596, %v591
        %v598 = vand.u32 2147483647, %v591
        %vm599 = vcmp.lt.f32.partialorder %v598, 0.0004427343
        %v600 = vsel %vm599, %v597, %v594
        %v601 = vsel %vm589, %v588, %v600
        %v602 = vpack.c.bf16 %v601, %v601
        %v603 = vld [vmem:[#allocation8] sm:$0xf]
        %v604 = vld [vmem:[#allocation8 + $0x4] sm:$0xf]
        %v605 = vld [vmem:[#allocation8 + $0x8] sm:$0xf]
        %v606 = vld [vmem:[#allocation8 + $0xc] sm:$0xf]
        %v607 = vld [vmem:[#allocation8 + $0x10] sm:$0xf]
        %v608 = vld [vmem:[#allocation8 + $0x14] sm:$0xf]
        %v609 = vld [vmem:[#allocation8 + $0x18] sm:$0xf]
        %v610 = vld [vmem:[#allocation8 + $0x1c] sm:$0xf]
        %v611 = vld [vmem:[#allocation8 + $0x20] sm:$0xf]
        %v612 = vld [vmem:[#allocation8 + $0x24] sm:$0xf]
        %v613 = vld [vmem:[#allocation8 + $0x28] sm:$0xf]
        %v614 = vld [vmem:[#allocation8 + $0x2c] sm:$0xf]
        %v615 = vld [vmem:[#allocation8 + $0x30] sm:$0xf]
        %v616 = vld [vmem:[#allocation8 + $0x34] sm:$0xf]
        %v617 = vld [vmem:[#allocation8 + $0x38] sm:$0xf]
        %v618 = vld [vmem:[#allocation8 + $0x3c] sm:$0xf]
        %v619 = vld [vmem:[%s7] sm:$0x1]
        %v621 = vperm.slane %v619, 0
        %v639 = vunpack.c.l.b16 %v603
        %v640 = vunpack.c.l.b16 %v604
        %v641 = vunpack.c.l.b16 %v605
        %v642 = vunpack.c.l.b16 %v606
        %v643 = vunpack.c.l.b16 %v607
        %v644 = vunpack.c.l.b16 %v608
        %v645 = vunpack.c.l.b16 %v609
        %v646 = vunpack.c.l.b16 %v610
        %v647 = vunpack.c.l.b16 %v611
        %v648 = vunpack.c.l.b16 %v612
        %v649 = vunpack.c.l.b16 %v613
        %v650 = vunpack.c.l.b16 %v614
        %v651 = vunpack.c.l.b16 %v615
        %v652 = vunpack.c.l.b16 %v616
        %v653 = vunpack.c.l.b16 %v617
        %v654 = vunpack.c.l.b16 %v618
        %v655 = vpack.c.b16 %v640, %v639
        %v656 = vpack.c.b16 %v642, %v641
        %v657 = vpack.c.b16 %v644, %v643
        %v658 = vpack.c.b16 %v646, %v645
        %v659 = vpack.c.b16 %v648, %v647
        %v660 = vpack.c.b16 %v650, %v649
        %v661 = vpack.c.b16 %v652, %v651
        %v662 = vpack.c.b16 %v654, %v653
        %671 = vmatpush.bf16.msra.mxu0 %v662
        %672 = vmatpush.bf16.msra.mxu0 %v661
        %673 = vmatpush.bf16.msra.mxu0 %v660
        %674 = vmatpush.bf16.msra.mxu0 %v659
        %675 = vmatpush.bf16.msra.mxu0 %v658
        %676 = vmatpush.bf16.msra.mxu0 %v657
        %677 = vmatpush.bf16.msra.mxu0 %v656
        %678 = vmatpush.bf16.msra.mxu0 %v655
        %679 = vmatmul.bf16.gmra.mxu0 %v602
        %v680 = vpop.f32.mrf.mxu0
        %v681 = vadd.f32 %v621, %v680
        %v682 = vpop.f32.mrf.mxu0
        %683 = vdwg.mxu0
        %v684 = vperm.slane %v463, 2
        %v685 = vmul.f32 %v684, %v681
        %vm686 = vcmp.gt.f32.partialorder %v685, 20.0
        %v687 = vmul.f32 %v685, 1.442695
        %v688 = vpow.pop %v687
        %v689 = vadd.f32 %v688, 1.0
        %v690 = vlog2.pop %v689
        %v691 = vmul.f32 %v690, 0.6931472
        %v692 = vmul.f32 -0.5, %v688
        %v693 = vadd.f32 %v692, 1.0
        %v694 = vmul.f32 %v693, %v688
        %v695 = vand.u32 2147483647, %v688
        %vm696 = vcmp.lt.f32.partialorder %v695, 0.0004427343
        %v697 = vsel %vm696, %v694, %v691
        %v698 = vsel %vm686, %v685, %v697
        %v699 = vld [vmem:[%s8] sm:$0x3]
        %v700 = vpack.c.bf16 %v698, %v698
        %v701 = vld [vmem:[%s9] sm:$0xf]
        %703 = vset.pattern.permute.xlu0 0
        %704 = vperm.xlu0 %703, %v701
        %v705 = vpop.permute.xlu0 %704
        %707 = vmatpush.bf16.xpose.msra.mxu0 0
        %708 = vmatpush.bf16.xpose.msra.mxu0 0
        %709 = vmatpush.bf16.xpose.msra.mxu0 0
        %710 = vmatpush.bf16.xpose.msra.mxu0 0
        %711 = vmatpush.bf16.xpose.msra.mxu0 0
        %712 = vmatpush.bf16.xpose.msra.mxu0 0
        %713 = vmatpush.bf16.xpose.msra.mxu0 0
        %714 = vmatpush.bf16.xpose.msra.mxu0 %v700
        %715 = vmatmul.bf16.gmra.mxu0 %v699
        %v716 = vpop.f32.mrf.mxu0
        %v717 = vadd.f32 %v705, %v716
        %v718 = vpop.f32.mrf.mxu0
        %719 = vdwg.mxu0
        %vm720 = vcmask 60416
        %721 = vst.msk [vmem:[%s448] sm:$0xf] %vm720, %v717
        %s722 = sand.u32 %s271, 1
        %s723 = scalar_lea.sflag [#allocation4], %s722
        %s724 = sand.u32 %s271, 1
        %s725 = smul.addr %s724, 4
        %s726 = scalar_lea.vmem [#allocation10], %s725
        // Predicated region
        $region77: #{tpu_custom_call.1} parent=59 // pred_check
          %p727 = pneg %p281
        $region78: #{tpu_custom_call.1} parent=59 // pred_check_branch
          %729 = sbr.rel (%p727) target = $region80
        $region79: #{tpu_custom_call.1} parent=59 // pred_region
          %731 = vsyncadd %s723, 0
          %s732 = sadd.s32 %s32, %s31
          %s733 = smul.addr %s732, 4
          %s734 = scalar_lea.hbm %s10, %s733
          %s736 = sshll.u32 %s726, 4
          %s737 = int_to_ptr.vmem [resolvable:$true] %s736
          %s738 = sshll.u32 %s734, 4
          %s739 = int_to_ptr.hbm [resolvable:$true] %s738
          %741 = dma.vmem_to_hbm [thread:$0]  %s737, 64, %s739, %s723
        $region80: #{tpu_custom_call.1} parent=59 // pred_fallthru
          _
      $region60: #{tpu_custom_call.1} parent=5 // pred_fallthru
        _
      %p742 = scmp.le.s32.totalorder 2, %s22
      // Predicated region
      $region81: #{tpu_custom_call.1} parent=5 // pred_check
        %p743 = pneg %p742
      $region82: #{tpu_custom_call.1} parent=5 // pred_check_branch
        %745 = sbr.rel (%p743) target = $region84
      $region83: #{tpu_custom_call.1} parent=5 // pred_region
        %s746 = ssub.s32 %s22, 2
        // Predicated region
        $region85: #{tpu_custom_call.1} parent=83 // pred_check
          %p747 = pneg %p287
        $region86: #{tpu_custom_call.1} parent=83 // pred_check_branch
          %749 = sbr.rel (%p747) target = $region88
        $region87: #{tpu_custom_call.1} parent=83 // pred_region
          %s750 = sand.u32 %s272, 1
          %s751 = scalar_lea.sflag [#allocation4], %s750
          %s752 = sand.u32 %s272, 1
          %s753 = smul.addr %s752, 4
          %s754 = scalar_lea.vmem [#allocation10], %s753
          %756 = dma.done %s751, 64
        $region88: #{tpu_custom_call.1} parent=83 // pred_fallthru
          _
      $region84: #{tpu_custom_call.1} parent=5 // pred_fallthru
        _
    $region6: #{tpu_custom_call.1} parent=1 // loop_footer
      %s26 = sadd.s32 1, %s22
    $region7: #{tpu_custom_call.1} parent=1 // loop_footer_branch
      %21 = sbr.rel target = $region3
    $region8: #{tpu_custom_call.1} parent=1 // loop_exit
      _
    %757 = vsyncpa [#allocation3], 1
    %s758 = scalar_lea.sflag [#allocation3], 1
    %759 = vsyncpa %s758, 1
    %760 = vsyncpa [#allocation6], 1
    %761 = vsyncpa [#allocation9], 1
    %762 = vsyncpa [#allocation4], 1
    %s763 = scalar_lea.sflag [#allocation4], 1
    %764 = vsyncpa %s763, 1

</llo_original>
